<compile_context>
chip_gen: v7x
topology: tpu7x:2x2x1
jax: 0.10.0
libtpu: 0.0.40
codegen_flags: <defaults>
</compile_context>

<pallas_src>
import jax
import jax.numpy as jnp
from jax.experimental import pallas as pl
from jax.experimental.pallas import tpu as pltpu


def critic_kernel(x_ref, w1_ref, b1_ref, w2_ref, b2_ref, w3_ref, b3_ref, o_ref):
    # x_ref: (TB, D) f32; w1 f32; w2 bf16; biases / w3 row f32; o_ref: (TB, 1) f32.
    x = x_ref[...]                                                      # (TB, D) f32
    # Layer 1: tiny K=32 contraction, keep f32 on the MXU (better numerics,
    # negligible cost share).
    h1 = jnp.dot(x, w1_ref[...], preferred_element_type=jnp.float32)   # (TB, 128)
    h1 = jnp.maximum(h1 + b1_ref[...], 0.0)                            # f32 VPU
    # Layer 2: the FLOP-dominant matmul -> bf16 MXU path, f32 accumulation.
    h2 = jnp.dot(h1.astype(jnp.bfloat16), w2_ref[...],
                 preferred_element_type=jnp.float32)                   # (TB, 256)
    h2 = jnp.maximum(h2 + b2_ref[...], 0.0)                            # f32 VPU
    # Layer 3 (256 -> 1): VPU multiply + XLU lane reduction.
    v = jnp.sum(h2 * w3_ref[...], axis=-1, keepdims=True)              # (TB, 1)
    o_ref[...] = v + b3_ref[...]


def _round_up(n, m):
    return ((n + m - 1) // m) * m


def critic_forward(state, params, *, block_b=2048, force_pallas=False):
    """state: (B, D) float32; params: dict of weights/biases. Returns (B, 1) f32."""
    w1, b1, w2, b2, w3, b3 = (params["w1"], params["b1"], params["w2"],
                              params["b2"], params["w3"], params["b3"])
    B, D = state.shape

    # Small/medium problems are dominated by launch overhead -> let XLA fuse.
    if B < 4096 and not force_pallas:
        return critic_reference(state, params)

    # Tile size: multiple of 8 (sublane), capped by block_b, and capped at
    # ceil(b_pad/2) so large batches produce >= 2 grid steps (v7x megacore).
    b_pad8 = _round_up(B, 8)
    if b_pad8 >= 16:
        half = _round_up(pl.cdiv(b_pad8, 2), 8)
        tb = min(block_b, half)
    else:
        tb = b_pad8
    tb = max(_round_up(tb, 8), 8)
    b_pad = _round_up(b_pad8, tb)

    # Pad batch with zero rows only when needed so every block is full and
    # (8,128)-aligned. No wrapper-side dtype cast of state (cast is in-kernel).
    x = state.astype(jnp.float32)
    if b_pad != B:
        x = jnp.pad(x, ((0, b_pad - B), (0, 0)))

    # Weight/bias prep (small one-time ops); layer-2 weights in bf16 for MXU.
    w1_f = w1.astype(jnp.float32)
    w2_bf = w2.astype(jnp.bfloat16)
    b1_f = b1.reshape(1, 128).astype(jnp.float32)
    b2_f = b2.reshape(1, 256).astype(jnp.float32)
    w3_row = w3.T.astype(jnp.float32)                  # explicit (256,1) -> (1,256)
    b3_f = b3.reshape(1, 1).astype(jnp.float32)

    grid = (b_pad // tb,)
    const2d = lambda a: pl.BlockSpec(a.shape, lambda i: (0, 0))

    out = pl.pallas_call(
        critic_kernel,
        out_shape=jax.ShapeDtypeStruct((b_pad, 1), jnp.float32),
        grid_spec=pltpu.PrefetchScalarGridSpec(
            num_scalar_prefetch=0,
            grid=grid,
            in_specs=[
                pl.BlockSpec((tb, D), lambda i: (i, 0)),   # state tile (pipelined)
                const2d(w1_f), const2d(b1_f),
                const2d(w2_bf), const2d(b2_f),
                const2d(w3_row), const2d(b3_f),
            ],
            out_specs=pl.BlockSpec((tb, 1), lambda i: (i, 0)),
        ),
        compiler_params=pltpu.CompilerParams(
            dimension_semantics=("parallel",)),
    )(x, w1_f, b1_f, w2_bf, b2_f, w3_row, b3_f)

    return out[:B]


def init_params(key, num_dimensions):
    """Deterministic init mimicking nn.Linear's U(-1/sqrt(fan_in), 1/sqrt(fan_in))."""
    ks = jax.random.split(key, 6)

    def linear(kw, kb, fan_in, fan_out):
        bound = 1.0 / jnp.sqrt(fan_in)
        w = jax.random.uniform(kw, (fan_in, fan_out), jnp.float32, -bound, bound)
        b = jax.random.uniform(kb, (1, fan_out), jnp.float32, -bound, bound)
        return w, b

    w1, b1 = linear(ks[0], ks[1], num_dimensions, 128)
    w2, b2 = linear(ks[2], ks[3], 128, 256)
    w3, b3 = linear(ks[4], ks[5], 256, 1)
    return {"w1": w1, "b1": b1, "w2": w2, "b2": b2, "w3": w3, "b3": b3}


def critic_reference(state, p):
    h1 = jnp.maximum(state @ p["w1"] + p["b1"], 0.0)
    h2 = jnp.maximum(h1 @ p["w2"] + p["b2"], 0.0)
    return h2 @ p["w3"] + p["b3"]


if __name__ == "__main__":
    key = jax.random.PRNGKey(0)
    k_param, k_state1, k_state2, k_state3 = jax.random.split(key, 4)

    num_dimensions = 32   # D
    params = init_params(k_param, num_dimensions)

    # Case 1: small demo batch (single tile, forces the Pallas path).
    batch = 8
    state = jax.random.normal(k_state1, (batch, num_dimensions), dtype=jnp.float32)
    out = jax.block_until_ready(critic_forward(state, params, force_pallas=True))
    ref = critic_reference(state, params)
    assert out.shape == (batch, 1)
    # bf16 MXU path for layer 2 vs f32 reference -> loosened tolerance.
    assert jnp.allclose(out, ref, atol=5e-2, rtol=5e-2)

    # Case 2: non-multiple-of-8 batch (exercises padding + 2-step grid).
    batch2 = 300
    state2 = jax.random.normal(k_state2, (batch2, num_dimensions), dtype=jnp.float32)
    out2 = jax.block_until_ready(critic_forward(state2, params, force_pallas=True))
    ref2 = critic_reference(state2, params)
    assert out2.shape == (batch2, 1)
    assert jnp.allclose(out2, ref2, atol=5e-2, rtol=5e-2)

    # Case 3: large batch (multi-step grid with the big 2048-row tiles).
    batch3 = 5000
    state3 = jax.random.normal(k_state3, (batch3, num_dimensions), dtype=jnp.float32)
    out3 = jax.block_until_ready(critic_forward(state3, params, force_pallas=True))
    ref3 = critic_reference(state3, params)
    assert out3.shape == (batch3, 1)
    assert jnp.allclose(out3, ref3, atol=5e-2, rtol=5e-2)

    print("KERNEL_OK")
</pallas_src>

<mosaic_0001>
module attributes {stable_mosaic.version = 11 : i64} {
  func.func @critic_kernel(%arg0: i32, %arg1: memref<8x32xf32, #tpu.memory_space<vmem>>, %arg2: memref<32x128xf32, #tpu.memory_space<vmem>>, %arg3: memref<1x128xf32, #tpu.memory_space<vmem>>, %arg4: memref<128x256xbf16, #tpu.memory_space<vmem>>, %arg5: memref<1x256xf32, #tpu.memory_space<vmem>>, %arg6: memref<1x256xf32, #tpu.memory_space<vmem>>, %arg7: memref<1x1xf32, #tpu.memory_space<vmem>>, %arg8: memref<8x1xf32, #tpu.memory_space<vmem>>) attributes {dimension_semantics = [#tpu.dimension_semantics<parallel>], iteration_bounds = array<i64: 1>, scalar_prefetch = 0 : i64, scratch_operands = 0 : i64, tpu.core_type = #tpu.core_type<tc>, window_params = [{transform_indices = @transform_0, window_bounds = array<i64: 8, 32>}, {pipeline_mode = #tpu.pipeline_mode<synchronous>, transform_indices = @transform_1, window_bounds = array<i64: 32, 128>}, {pipeline_mode = #tpu.pipeline_mode<synchronous>, transform_indices = @transform_2, window_bounds = array<i64: 1, 128>}, {pipeline_mode = #tpu.pipeline_mode<synchronous>, transform_indices = @transform_3, window_bounds = array<i64: 128, 256>}, {pipeline_mode = #tpu.pipeline_mode<synchronous>, transform_indices = @transform_4, window_bounds = array<i64: 1, 256>}, {pipeline_mode = #tpu.pipeline_mode<synchronous>, transform_indices = @transform_5, window_bounds = array<i64: 1, 256>}, {pipeline_mode = #tpu.pipeline_mode<synchronous>, transform_indices = @transform_6, window_bounds = array<i64: 1, 1>}, {transform_indices = @transform_7, window_bounds = array<i64: 8, 1>}]} {
    %c0 = arith.constant 0 : index
    %c0_0 = arith.constant 0 : index
    %0 = vector.load %arg1[%c0, %c0_0] : memref<8x32xf32, #tpu.memory_space<vmem>>, vector<8x32xf32>
    %c0_1 = arith.constant 0 : index
    %c0_2 = arith.constant 0 : index
    %1 = vector.load %arg2[%c0_1, %c0_2] : memref<32x128xf32, #tpu.memory_space<vmem>>, vector<32x128xf32>
    %cst = arith.constant dense<0.000000e+00> : vector<8x128xf32>
    %2 = tpu.matmul %0, %1, %cst {dimension_numbers = #tpu.dot_dimension_numbers<[1], [0], [0], [1], [0, 0, 1, 1], [], []>} : vector<8x32xf32>, vector<32x128xf32>, vector<8x128xf32> -> vector<8x128xf32>
    %c0_3 = arith.constant 0 : index
    %c0_4 = arith.constant 0 : index
    %3 = vector.load %arg3[%c0_3, %c0_4] : memref<1x128xf32, #tpu.memory_space<vmem>>, vector<1x128xf32>
    %4 = vector.broadcast %3 : vector<1x128xf32> to vector<8x128xf32>
    %5 = arith.addf %2, %4 : vector<8x128xf32>
    %cst_5 = arith.constant 0.000000e+00 : f32
    %6 = vector.broadcast %cst_5 : f32 to vector<8x128xf32>
    %7 = arith.maximumf %5, %6 : vector<8x128xf32>
    %8 = arith.truncf %7 : vector<8x128xf32> to vector<8x128xbf16>
    %c0_6 = arith.constant 0 : index
    %c0_7 = arith.constant 0 : index
    %9 = vector.load %arg4[%c0_6, %c0_7] : memref<128x256xbf16, #tpu.memory_space<vmem>>, vector<128x256xbf16>
    %cst_8 = arith.constant dense<0.000000e+00> : vector<8x256xf32>
    %10 = tpu.matmul %8, %9, %cst_8 {dimension_numbers = #tpu.dot_dimension_numbers<[1], [0], [0], [1], [0, 0, 1, 1], [], []>} : vector<8x128xbf16>, vector<128x256xbf16>, vector<8x256xf32> -> vector<8x256xf32>
    %c0_9 = arith.constant 0 : index
    %c0_10 = arith.constant 0 : index
    %11 = vector.load %arg5[%c0_9, %c0_10] : memref<1x256xf32, #tpu.memory_space<vmem>>, vector<1x256xf32>
    %12 = vector.broadcast %11 : vector<1x256xf32> to vector<8x256xf32>
    %13 = arith.addf %10, %12 : vector<8x256xf32>
    %cst_11 = arith.constant 0.000000e+00 : f32
    %14 = vector.broadcast %cst_11 : f32 to vector<8x256xf32>
    %15 = arith.maximumf %13, %14 : vector<8x256xf32>
    %c0_12 = arith.constant 0 : index
    %c0_13 = arith.constant 0 : index
    %16 = vector.load %arg6[%c0_12, %c0_13] : memref<1x256xf32, #tpu.memory_space<vmem>>, vector<1x256xf32>
    %17 = vector.broadcast %16 : vector<1x256xf32> to vector<8x256xf32>
    %18 = arith.mulf %15, %17 : vector<8x256xf32>
    %cst_14 = arith.constant dense<0.000000e+00> : vector<8xf32>
    %19 = vector.multi_reduction <add>, %18, %cst_14 [1] : vector<8x256xf32> to vector<8xf32>
    %20 = vector.shape_cast %19 : vector<8xf32> to vector<8x1xf32>
    %c0_15 = arith.constant 0 : index
    %c0_16 = arith.constant 0 : index
    %21 = vector.load %arg7[%c0_15, %c0_16] : memref<1x1xf32, #tpu.memory_space<vmem>>, vector<1x1xf32>
    %22 = vector.broadcast %21 : vector<1x1xf32> to vector<8x1xf32>
    %23 = arith.addf %20, %22 : vector<8x1xf32>
    %c0_17 = arith.constant 0 : index
    %c0_18 = arith.constant 0 : index
    %24 = vector.load %arg8[%c0_17, %c0_18] : memref<8x1xf32, #tpu.memory_space<vmem>>, vector<8x1xf32>
    tpu.vector_store %arg8[%c0_17, %c0_18], %23 {strides = array<i32>} : memref<8x1xf32, #tpu.memory_space<vmem>>, vector<8x1xf32>,
    return
  }
  func.func @transform_0(%arg0: i32) -> (i32, i32) {
    %c0_i32 = arith.constant 0 : i32
    %c0_i32_0 = arith.constant 0 : i32
    return %arg0, %c0_i32 : i32, i32
  }
  func.func @transform_1(%arg0: i32) -> (i32, i32) {
    %c0_i32 = arith.constant 0 : i32
    %c0_i32_0 = arith.constant 0 : i32
    %c0_i32_1 = arith.constant 0 : i32
    return %c0_i32, %c0_i32_0 : i32, i32
  }
  func.func @transform_2(%arg0: i32) -> (i32, i32) {
    %c0_i32 = arith.constant 0 : i32
    %c0_i32_0 = arith.constant 0 : i32
    %c0_i32_1 = arith.constant 0 : i32
    return %c0_i32, %c0_i32_0 : i32, i32
  }
  func.func @transform_3(%arg0: i32) -> (i32, i32) {
    %c0_i32 = arith.constant 0 : i32
    %c0_i32_0 = arith.constant 0 : i32
    %c0_i32_1 = arith.constant 0 : i32
    return %c0_i32, %c0_i32_0 : i32, i32
  }
  func.func @transform_4(%arg0: i32) -> (i32, i32) {
    %c0_i32 = arith.constant 0 : i32
    %c0_i32_0 = arith.constant 0 : i32
    %c0_i32_1 = arith.constant 0 : i32
    return %c0_i32, %c0_i32_0 : i32, i32
  }
  func.func @transform_5(%arg0: i32) -> (i32, i32) {
    %c0_i32 = arith.constant 0 : i32
    %c0_i32_0 = arith.constant 0 : i32
    %c0_i32_1 = arith.constant 0 : i32
    return %c0_i32, %c0_i32_0 : i32, i32
  }
  func.func @transform_6(%arg0: i32) -> (i32, i32) {
    %c0_i32 = arith.constant 0 : i32
    %c0_i32_0 = arith.constant 0 : i32
    %c0_i32_1 = arith.constant 0 : i32
    return %c0_i32, %c0_i32_0 : i32, i32
  }
  func.func @transform_7(%arg0: i32) -> (i32, i32) {
    %c0_i32 = arith.constant 0 : i32
    %c0_i32_0 = arith.constant 0 : i32
    return %arg0, %c0_i32 : i32, i32
  }
}

</mosaic_0001>

<llo_original>
// kernel: tpu_custom_call.1
$region0: #{tpu_custom_call.1}
  #allocation0 [shape = 'u32[]', space=smem, size = 0x4, offset = 0x4, fixed_abs, tag = 'smem constant byte address 0x4 - core index']
  #allocation1 [shape = 'u32[144,128]{1,0:T(1,128)}', space=vmem, size = 0x12000, scoped, tag = 'internal scratch']
  #allocation2 [shape = 'f32[1,1]{1,0:T(1,128)S(1)}', space=vmem, size = 0x200, scoped, tag = 'scoped memory for tpu_custom_call.1']
  %s0 = inlined_call_operand.hbm [shape: f32[8,32], index: 0, kind: input, shape index: {}]
  %s1 = inlined_call_operand.hbm [shape: f32[32,128], index: 1, kind: input, shape index: {}]
  %s2 = inlined_call_operand.vmem [shape: f32[1,128], index: 2, kind: input, shape index: {}]
  %s3 = inlined_call_operand.hbm [shape: bf16[128,256], index: 3, kind: input, shape index: {}]
  %s4 = inlined_call_operand.vmem [shape: f32[1,256], index: 4, kind: input, shape index: {}]
  %s5 = inlined_call_operand.vmem [shape: f32[1,256], index: 5, kind: input, shape index: {}]
  %s6 = inlined_call_operand.<no memory space> [shape: f32[1,1], index: 6, kind: input, shape index: {}]
  %s7 = inlined_call_operand.vmem [shape: f32[8,1], index: 7, kind: output, shape index: {}]
  %s8 = sld [smem:[#allocation0]]
  $region50: #{tpu_custom_call.1} parent=0
    _
  %s10 = ssub.s32 1, %s8
  %s11 = scalar_select 0, %s10, %s8
  %v12 = vstv %s6
  %13 = vst [vmem:[#allocation2] sm:$0x1] %v12
  $region1: #{tpu_custom_call.1} parent=0
    #allocation3 [shape = 'u8[4096]{0}', space=vmem, size = 0x1000, scoped, tag = 'input window, operand 0, single buffered']
    #allocation4 [shape = 's32[1]{0}', space=sflag, size = 0x4, scoped, tag = 'scoped memory for tpu_custom_call.1']
    #allocation5 [shape = 'u8[16384]{0}', space=vmem, size = 0x4000, scoped, tag = 'input window, operand 1, single buffered']
    #allocation6 [shape = 's32[1]{0}', space=sflag, size = 0x4, scoped, tag = 'scoped memory for tpu_custom_call.1']
    #allocation7 [shape = 'u8[65536]{0}', space=vmem, size = 0x10000, scoped, tag = 'input window, operand 3, single buffered']
    %14 = vsyncpa [#allocation4], 0
    %15 = vsyncpa [#allocation6], 0
    // Predicated region
    $region2: #{tpu_custom_call.1} parent=1 // pred_check
      _
    $region3: #{tpu_custom_call.1} parent=1 // pred_check_branch
      %17 = sbr.rel (0) target = $region5
    $region4: #{tpu_custom_call.1} parent=1 // pred_region
      %s19 = ssub.s32 128, 128
      %20 = vsyncadd [#allocation4], %s19
      %s22 = sshll.u32 [#allocation3], 4
      %s23 = int_to_ptr.vmem [resolvable:$true] %s22
      %25 = dma.hbm_to_vmem [thread:$0]  %s0, 128, %s23, [#allocation4]
    $region5: #{tpu_custom_call.1} parent=1 // pred_fallthru
      _
    // Predicated region
    $region6: #{tpu_custom_call.1} parent=1 // pred_check
      _
    $region7: #{tpu_custom_call.1} parent=1 // pred_check_branch
      %27 = sbr.rel (0) target = $region9
    $region8: #{tpu_custom_call.1} parent=1 // pred_region
      %s29 = ssub.s32 512, 512
      %30 = vsyncadd [#allocation6], %s29
      %s31 = sshll.u32 [#allocation5], 4
      %s32 = int_to_ptr.vmem [resolvable:$true] %s31
      %37 = dma.hbm_to_vmem [thread:$0]  %s1, 512, %s32, [#allocation6], 128, 128, 8
    $region9: #{tpu_custom_call.1} parent=1 // pred_fallthru
      _
    // Predicated region
    $region10: #{tpu_custom_call.1} parent=1 // pred_check
      _
    $region11: #{tpu_custom_call.1} parent=1 // pred_check_branch
      %39 = sbr.rel (0) target = $region13
    $region12: #{tpu_custom_call.1} parent=1 // pred_region
      _
    $region13: #{tpu_custom_call.1} parent=1 // pred_fallthru
      _
    // Predicated region
    $region14: #{tpu_custom_call.1} parent=1 // pred_check
      _
    $region15: #{tpu_custom_call.1} parent=1 // pred_check_branch
      %41 = sbr.rel (0) target = $region17
    $region16: #{tpu_custom_call.1} parent=1 // pred_region
      %s43 = ssub.s32 2048, 2048
      %44 = vsyncadd [#allocation6], %s43
      %s45 = sshll.u32 [#allocation7], 4
      %s46 = int_to_ptr.vmem [resolvable:$true] %s45
      %51 = dma.hbm_to_vmem [thread:$0]  %s3, 2048, %s46, [#allocation6], 128, 128, 8
    $region17: #{tpu_custom_call.1} parent=1 // pred_fallthru
      _
    // Predicated region
    $region18: #{tpu_custom_call.1} parent=1 // pred_check
      _
    $region19: #{tpu_custom_call.1} parent=1 // pred_check_branch
      %53 = sbr.rel (0) target = $region21
    $region20: #{tpu_custom_call.1} parent=1 // pred_region
      _
    $region21: #{tpu_custom_call.1} parent=1 // pred_fallthru
      _
    // Predicated region
    $region22: #{tpu_custom_call.1} parent=1 // pred_check
      _
    $region23: #{tpu_custom_call.1} parent=1 // pred_check_branch
      %55 = sbr.rel (0) target = $region25
    $region24: #{tpu_custom_call.1} parent=1 // pred_region
      _
    $region25: #{tpu_custom_call.1} parent=1 // pred_fallthru
      _
    // Predicated region
    $region26: #{tpu_custom_call.1} parent=1 // pred_check
      _
    $region27: #{tpu_custom_call.1} parent=1 // pred_check_branch
      %57 = sbr.rel (0) target = $region29
    $region28: #{tpu_custom_call.1} parent=1 // pred_region
      _
    $region29: #{tpu_custom_call.1} parent=1 // pred_fallthru
      _
    // Predicated region
    $region30: #{tpu_custom_call.1} parent=1 // pred_check
      _
    $region31: #{tpu_custom_call.1} parent=1 // pred_check_branch
      %59 = sbr.rel (0) target = $region33
    $region32: #{tpu_custom_call.1} parent=1 // pred_region
      %60 = dma.done [#allocation4], 128
    $region33: #{tpu_custom_call.1} parent=1 // pred_fallthru
      _
    // Predicated region
    $region34: #{tpu_custom_call.1} parent=1 // pred_check
      _
    $region35: #{tpu_custom_call.1} parent=1 // pred_check_branch
      %62 = sbr.rel (0) target = $region37
    $region36: #{tpu_custom_call.1} parent=1 // pred_region
      %63 = dma.done [#allocation6], 512
    $region37: #{tpu_custom_call.1} parent=1 // pred_fallthru
      _
    // Predicated region
    $region38: #{tpu_custom_call.1} parent=1 // pred_check
      _
    $region39: #{tpu_custom_call.1} parent=1 // pred_check_branch
      %65 = sbr.rel (0) target = $region41
    $region40: #{tpu_custom_call.1} parent=1 // pred_region
      %66 = dma.done [#allocation6], 2048
    $region41: #{tpu_custom_call.1} parent=1 // pred_fallthru
      _
    %v68 = vld [vmem:[#allocation3] sm:$0xff]
    %v69 = vld [vmem:[#allocation5] sm:$0xff]
    %v70 = vld [vmem:[#allocation5 + $0x8] sm:$0xff]
    %v71 = vld [vmem:[#allocation5 + $0x10] sm:$0xff]
    %v72 = vld [vmem:[#allocation5 + $0x18] sm:$0xff]
    %v73 = vld [vmem:[%s2] sm:$0x1]
    %v75 = vlaneseq
    %v76 = vshrl.u32 %v75, 7
    %v77 = vsub.s32 0, %v76
    %v78 = vrot.slane %v73, %v77
    %vm80 = vcmask 261120
    %v82 = vsel %vm80, %v68, 0
    %84 = vmatprep.subr.mxu0 0.0
    %85 = vmatpush1.msra.mxu0 %v69
    %86 = vmatprep.subr.mxu0 0.0
    %87 = vmatpush1.msra.mxu0 %v70
    %88 = vmatprep.subr.mxu0 0.0
    %89 = vmatpush1.msra.mxu0 %v71
    %90 = vmatprep.subr.mxu0 0.0
    %91 = vmatpush1.msra.mxu0 %v72
    %92 = vmatprep.subr.mxu0 0.0
    %93 = vmatpush1.msra.mxu0 0.0
    %94 = vmatprep.subr.mxu0 0.0
    %95 = vmatpush1.msra.mxu0 0.0
    %96 = vmatprep.subr.mxu0 0.0
    %97 = vmatpush1.msra.mxu0 0.0
    %98 = vmatprep.subr.mxu0 0.0
    %99 = vmatpush1.msra.mxu0 0.0
    %100 = vmatprep.subr.mxu0 0.0
    %101 = vmatpush1.msra.mxu0 0.0
    %102 = vmatprep.subr.mxu0 0.0
    %103 = vmatpush1.msra.mxu0 0.0
    %104 = vmatprep.subr.mxu0 0.0
    %105 = vmatpush1.msra.mxu0 0.0
    %106 = vmatprep.subr.mxu0 0.0
    %107 = vmatpush1.msra.mxu0 0.0
    %108 = vmatprep.subr.mxu0 0.0
    %109 = vmatpush1.msra.mxu0 0.0
    %110 = vmatprep.subr.mxu0 0.0
    %111 = vmatpush1.msra.mxu0 0.0
    %112 = vmatprep.subr.mxu0 0.0
    %113 = vmatpush1.msra.mxu0 0.0
    %114 = vmatprep.subr.mxu0 0.0
    %115 = vmatpush1.msra.mxu0 0.0
    %116 = vmatprep.subr.mxu0 0.0
    %117 = vmatpush1.msra.mxu0 0.0
    %118 = vmatprep.subr.mxu0 0.0
    %119 = vmatpush1.msra.mxu0 0.0
    %120 = vmatprep.subr.mxu0 0.0
    %121 = vmatpush1.msra.mxu0 0.0
    %122 = vmatprep.subr.mxu0 0.0
    %123 = vmatpush1.msra.mxu0 0.0
    %124 = vmatprep.subr.mxu0 0.0
    %125 = vmatpush1.msra.mxu0 0.0
    %126 = vmatprep.subr.mxu0 0.0
    %127 = vmatpush1.msra.mxu0 0.0
    %128 = vmatprep.subr.mxu0 0.0
    %129 = vmatpush1.msra.mxu0 0.0
    %130 = vmatprep.subr.mxu0 0.0
    %131 = vmatpush1.msra.mxu0 0.0
    %132 = vmatprep.subr.mxu0 0.0
    %133 = vmatpush1.msra.mxu0 0.0
    %134 = vmatprep.subr.mxu0 0.0
    %135 = vmatpush1.msra.mxu0 0.0
    %136 = vmatprep.subr.mxu0 0.0
    %137 = vmatpush1.msra.mxu0 0.0
    %138 = vmatprep.subr.mxu0 0.0
    %139 = vmatpush1.msra.mxu0 0.0
    %140 = vmatprep.subr.mxu0 0.0
    %141 = vmatpush1.msra.mxu0 0.0
    %142 = vmatprep.subr.mxu0 0.0
    %143 = vmatpush1.msra.mxu0 0.0
    %144 = vmatprep.subr.mxu0 0.0
    %145 = vmatpush1.msra.mxu0 0.0
    %146 = vmatprep.subr.mxu0 0.0
    %147 = vmatpush1.msra.mxu0 0.0
    %148 = vmatprep.mubr.f32.mxu0 0.0
    %149 = vmatmul.mubr.f32.gmra.mrb[0].mxu0 %v82
    %v150 = vpop.f32.mrb[0].mxu0
    %v151 = vadd.f32 %v78, %v150
    %v152 = vpop.f32.mrb[0].mxu0
    %153 = vdwg.mxu0
    %v154 = vmax.f32 %v151, 0.0
    %v155 = vpack.c.bf16 %v154, %v154
    %v156 = vld [vmem:[#allocation7] sm:$0xff]
    %v157 = vld [vmem:[#allocation7 + $0x8] sm:$0xff]
    %v158 = vld [vmem:[#allocation7 + $0x10] sm:$0xff]
    %v159 = vld [vmem:[#allocation7 + $0x18] sm:$0xff]
    %v160 = vld [vmem:[#allocation7 + $0x20] sm:$0xff]
    %v161 = vld [vmem:[#allocation7 + $0x28] sm:$0xff]
    %v162 = vld [vmem:[#allocation7 + $0x30] sm:$0xff]
    %v163 = vld [vmem:[#allocation7 + $0x38] sm:$0xff]
    %v164 = vld [vmem:[#allocation7 + $0x40] sm:$0xff]
    %v165 = vld [vmem:[#allocation7 + $0x48] sm:$0xff]
    %v166 = vld [vmem:[#allocation7 + $0x50] sm:$0xff]
    %v167 = vld [vmem:[#allocation7 + $0x58] sm:$0xff]
    %v168 = vld [vmem:[#allocation7 + $0x60] sm:$0xff]
    %v169 = vld [vmem:[#allocation7 + $0x68] sm:$0xff]
    %v170 = vld [vmem:[#allocation7 + $0x70] sm:$0xff]
    %v171 = vld [vmem:[#allocation7 + $0x78] sm:$0xff]
    %v172 = vld [vmem:[%s4] sm:$0x3]
    %v174 = vlaneseq
    %v175 = vshrl.u32 %v174, 7
    %v176 = vsub.s32 0, %v175
    %v177 = vrot.slane %v172, %v176
    %v178 = vlaneseq
    %v179 = vshrl.u32 %v178, 7
    %v180 = vsub.s32 1, %v179
    %v181 = vrot.slane %v172, %v180
    %v200 = vunpack.c.l.b16 %v156
    %v201 = vunpack.c.h.b16 %v156
    %v202 = vunpack.c.l.b16 %v157
    %v203 = vunpack.c.h.b16 %v157
    %v204 = vunpack.c.l.b16 %v158
    %v205 = vunpack.c.h.b16 %v158
    %v206 = vunpack.c.l.b16 %v159
    %v207 = vunpack.c.h.b16 %v159
    %v208 = vunpack.c.l.b16 %v160
    %v209 = vunpack.c.h.b16 %v160
    %v210 = vunpack.c.l.b16 %v161
    %v211 = vunpack.c.h.b16 %v161
    %v212 = vunpack.c.l.b16 %v162
    %v213 = vunpack.c.h.b16 %v162
    %v214 = vunpack.c.l.b16 %v163
    %v215 = vunpack.c.h.b16 %v163
    %v216 = vunpack.c.l.b16 %v164
    %v217 = vunpack.c.h.b16 %v164
    %v218 = vunpack.c.l.b16 %v165
    %v219 = vunpack.c.h.b16 %v165
    %v220 = vunpack.c.l.b16 %v166
    %v221 = vunpack.c.h.b16 %v166
    %v222 = vunpack.c.l.b16 %v167
    %v223 = vunpack.c.h.b16 %v167
    %v224 = vunpack.c.l.b16 %v168
    %v225 = vunpack.c.h.b16 %v168
    %v226 = vunpack.c.l.b16 %v169
    %v227 = vunpack.c.h.b16 %v169
    %v228 = vunpack.c.l.b16 %v170
    %v229 = vunpack.c.h.b16 %v170
    %v230 = vunpack.c.l.b16 %v171
    %v231 = vunpack.c.h.b16 %v171
    %v232 = vpack.c.b16 %v202, %v200
    %v233 = vpack.c.b16 %v203, %v201
    %v234 = vpack.c.b16 %v206, %v204
    %v235 = vpack.c.b16 %v207, %v205
    %v236 = vpack.c.b16 %v210, %v208
    %v237 = vpack.c.b16 %v211, %v209
    %v238 = vpack.c.b16 %v214, %v212
    %v239 = vpack.c.b16 %v215, %v213
    %v240 = vpack.c.b16 %v218, %v216
    %v241 = vpack.c.b16 %v219, %v217
    %v242 = vpack.c.b16 %v222, %v220
    %v243 = vpack.c.b16 %v223, %v221
    %v244 = vpack.c.b16 %v226, %v224
    %v245 = vpack.c.b16 %v227, %v225
    %v246 = vpack.c.b16 %v230, %v228
    %v247 = vpack.c.b16 %v231, %v229
    %264 = vmatprep.subr.bf16.mxu0 %v233
    %265 = vmatpush1.bf16.msra.mxu0 %v232
    %266 = vmatprep.subr.bf16.mxu0 %v235
    %267 = vmatpush1.bf16.msra.mxu0 %v234
    %268 = vmatprep.subr.bf16.mxu0 %v237
    %269 = vmatpush1.bf16.msra.mxu0 %v236
    %270 = vmatprep.subr.bf16.mxu0 %v239
    %271 = vmatpush1.bf16.msra.mxu0 %v238
    %272 = vmatprep.subr.bf16.mxu0 %v241
    %273 = vmatpush1.bf16.msra.mxu0 %v240
    %274 = vmatprep.subr.bf16.mxu0 %v243
    %275 = vmatpush1.bf16.msra.mxu0 %v242
    %276 = vmatprep.subr.bf16.mxu0 %v245
    %277 = vmatpush1.bf16.msra.mxu0 %v244
    %278 = vmatprep.subr.bf16.mxu0 %v247
    %279 = vmatpush1.bf16.msra.mxu0 %v246
    %280 = vmatprep.subr.bf16.mxu0 0
    %281 = vmatpush1.bf16.msra.mxu0 0
    %282 = vmatprep.subr.bf16.mxu0 0
    %283 = vmatpush1.bf16.msra.mxu0 0
    %284 = vmatprep.subr.bf16.mxu0 0
    %285 = vmatpush1.bf16.msra.mxu0 0
    %286 = vmatprep.subr.bf16.mxu0 0
    %287 = vmatpush1.bf16.msra.mxu0 0
    %288 = vmatprep.subr.bf16.mxu0 0
    %289 = vmatpush1.bf16.msra.mxu0 0
    %290 = vmatprep.subr.bf16.mxu0 0
    %291 = vmatpush1.bf16.msra.mxu0 0
    %292 = vmatprep.subr.bf16.mxu0 0
    %293 = vmatpush1.bf16.msra.mxu0 0
    %294 = vmatprep.subr.bf16.mxu0 0
    %295 = vmatpush1.bf16.msra.mxu0 0
    %296 = vmatprep.mubr.bf16.mxu0 0
    %297 = vmatmul.mubr.bf16.gmra.mrb[0].mxu0 %v155
    %v298 = vpop.f32.mrb[0].mxu0
    %v299 = vadd.f32 %v177, %v298
    %v300 = vpop.f32.mrb[0].mxu0
    %v301 = vadd.f32 %v181, %v300
    %v302 = vpop.f32.mrb[0].mxu0
    %v303 = vpop.f32.mrb[0].mxu0
    %304 = vdwg.mxu0
    %v305 = vmax.f32 %v299, 0.0
    %v306 = vmax.f32 %v301, 0.0
    %v307 = vld [vmem:[%s5] sm:$0x3]
    %v309 = vlaneseq
    %v310 = vshrl.u32 %v309, 7
    %v311 = vsub.s32 0, %v310
    %v312 = vrot.slane %v307, %v311
    %v313 = vlaneseq
    %v314 = vshrl.u32 %v313, 7
    %v315 = vsub.s32 1, %v314
    %v316 = vrot.slane %v307, %v315
    %v319 = vmul.f32 %v305, %v312
    %v320 = vmul.f32 %v306, %v316
    %v321 = vadd.f32 %v319, %v320
    %322 = vadd.xlane.f32.xlu0 %v321
    %v323 = vpop.xlane.xlu0 %322
    %v324 = vld [vmem:[#allocation2] sm:$0x1]
    %v326 = vlaneseq
    %v327 = vshrl.u32 %v326, 7
    %v328 = vsub.s32 0, %v327
    %v329 = vrot.slane %v324, %v328
    %v331 = vadd.f32 %v323, %v329
    %vm332 = vcmask 7168
    %333 = vst.msk [vmem:[%s7] sm:$0xff] %vm332, %v331
    // Predicated region
    $region42: #{tpu_custom_call.1} parent=1 // pred_check
      _
    $region43: #{tpu_custom_call.1} parent=1 // pred_check_branch
      %335 = sbr.rel (0) target = $region45
    $region44: #{tpu_custom_call.1} parent=1 // pred_region
      _
    $region45: #{tpu_custom_call.1} parent=1 // pred_fallthru
      _
    // Predicated region
    $region46: #{tpu_custom_call.1} parent=1 // pred_check
      _
    $region47: #{tpu_custom_call.1} parent=1 // pred_check_branch
      %337 = sbr.rel (0) target = $region49
    $region48: #{tpu_custom_call.1} parent=1 // pred_region
      _
    $region49: #{tpu_custom_call.1} parent=1 // pred_fallthru
      _
    %338 = vsyncpa [#allocation4], 1
    %339 = vsyncpa [#allocation6], 1

</llo_original>
